<compile_context>
chip_gen: v7x
topology: tpu7x:2x2x1
jax: 0.10.0
libtpu: 0.0.40
codegen_flags: <defaults>
</compile_context>

<pallas_src>
import math
import functools

import jax
import jax.numpy as jnp
from jax import lax
from jax.experimental import pallas as pl
from jax.experimental.pallas import tpu as pltpu


def _mha_kernel(q_ref, k_ref, v_ref,
                wq_ref, bq_ref, wk_ref, bk_ref, wv_ref, bv_ref,
                wo_ref, bo_ref,
                out_ref, attn_ref,
                acc_ref,
                *, n_heads, d_k, scale):
    """One (batch, q_tile, head) step of multi-head attention.

    q_ref:  (1, TQ, D)   query rows for this q-tile
    k_ref:  (1, S,  D)   full key rows for this batch element
    v_ref:  (1, S,  D)   full value rows for this batch element
    w*_ref: per-head weight slices  (1, D, d_k) / (1, d_k, D)
    b*_ref: per-head bias slices    (1, 1, d_k) / (1, D)
    out_ref:  (1, TQ, D)     accumulated over heads (written at h == H-1)
    attn_ref: (1, 1, TQ, S)  per-head attention probabilities
    acc_ref:  (TQ, D) f32 VMEM scratch accumulator
    """
    h = pl.program_id(2)

    x_q = q_ref[0]                       # (TQ, D)
    x_k = k_ref[0]                       # (S,  D)
    x_v = v_ref[0]                       # (S,  D)

    wq = wq_ref[0]                       # (D, d_k)
    wk = wk_ref[0]
    wv = wv_ref[0]
    wo = wo_ref[0]                       # (d_k, D)
    mm_dtype = wq.dtype                  # feed the MXU in the model dtype

    # Per-head projections, f32 accumulation on the MXU. The 1/sqrt(d_k)
    # scale is folded into Q (TQ*d_k work, not TQ*S).
    qh = (jnp.dot(x_q, wq, preferred_element_type=jnp.float32) + bq_ref[0]) * scale
    kh = jnp.dot(x_k, wk, preferred_element_type=jnp.float32) + bk_ref[0]   # (S, d_k)
    vh = jnp.dot(x_v, wv, preferred_element_type=jnp.float32) + bv_ref[0]   # (S, d_k)

    # scores[q, k] = <qh[q], kh[k]>  — contraction over d_k, no transpose.
    scores = lax.dot_general(
        qh.astype(mm_dtype), kh.astype(mm_dtype),
        dimension_numbers=(((1,), (1,)), ((), ())),
        preferred_element_type=jnp.float32)                                 # (TQ, S)

    # Numerically-stable softmax (max/exp/sum in f32), reciprocal-multiply.
    m = jnp.max(scores, axis=-1, keepdims=True)
    e = jnp.exp(scores - m)
    l = jnp.sum(e, axis=-1, keepdims=True)
    p = e * pl.reciprocal(l, approx=True)                                   # (TQ, S)

    attn_ref[0, 0] = p.astype(attn_ref.dtype)

    # Context and per-head contribution to the output projection.
    ctx = jnp.dot(p.astype(mm_dtype), vh.astype(mm_dtype),
                  preferred_element_type=jnp.float32)                       # (TQ, d_k)
    partial = jnp.dot(ctx.astype(mm_dtype), wo,
                      preferred_element_type=jnp.float32)                   # (TQ, D)

    @pl.when(h == 0)
    def _():
        acc_ref[...] = jnp.zeros_like(acc_ref)

    acc_ref[...] += partial

    @pl.when(h == n_heads - 1)
    def _():
        out_ref[0] = (acc_ref[...] + bo_ref[...]).astype(out_ref.dtype)


def multi_head_attention(query, key, value, params, n_heads):
    """query/key/value: (B, S, D). params: pre-transposed (D_in, D_out) weights,
    (1, D) biases. Returns (output (B,S,D), attention_weights (B,H,S,S))."""
    B, S, D = query.shape
    assert D % n_heads == 0
    d_k = D // n_heads

    # q-tile size: whole sequence for short S, 128-row tiles otherwise.
    TQ = S if S <= 128 else 128
    assert S % TQ == 0  # TODO(synk): pad ragged sequence lengths to a multiple of the q-tile.
    n_qt = S // TQ

    # Per-head weight/bias slices built once in the wrapper (layout plumbing,
    # outside the kernel): (D, D) -> (H, D, d_k), (1, D) -> (H, 1, d_k).
    def split_w(w):
        return w.reshape(D, n_heads, d_k).transpose(1, 0, 2)

    def split_b(b):
        return b.reshape(1, n_heads, d_k).transpose(1, 0, 2)

    wq_h, wk_h, wv_h = split_w(params["wq"]), split_w(params["wk"]), split_w(params["wv"])
    bq_h, bk_h, bv_h = split_b(params["bq"]), split_b(params["bk"]), split_b(params["bv"])
    wo_h = params["wo"].reshape(n_heads, d_k, D)     # (H, d_k, D)
    bo = params["bo"]                                # (1, D)

    kernel = functools.partial(_mha_kernel, n_heads=n_heads, d_k=d_k,
                               scale=1.0 / math.sqrt(d_k))

    q_spec = pl.BlockSpec((1, TQ, D), lambda b, qi, h: (b, qi, 0))
    kv_spec = pl.BlockSpec((1, S, D), lambda b, qi, h: (b, 0, 0))
    wh_spec = pl.BlockSpec((1, D, d_k), lambda b, qi, h: (h, 0, 0))
    bh_spec = pl.BlockSpec((1, 1, d_k), lambda b, qi, h: (h, 0, 0))
    wo_spec = pl.BlockSpec((1, d_k, D), lambda b, qi, h: (h, 0, 0))
    bo_spec = pl.BlockSpec((1, D), lambda b, qi, h: (0, 0))

    out, attn = pl.pallas_call(
        kernel,
        out_shape=(jax.ShapeDtypeStruct((B, S, D), query.dtype),
                   jax.ShapeDtypeStruct((B, n_heads, S, S), query.dtype)),
        grid_spec=pltpu.PrefetchScalarGridSpec(
            num_scalar_prefetch=0,
            grid=(B, n_qt, n_heads),            # head = innermost reduction axis
            in_specs=[q_spec, kv_spec, kv_spec,
                      wh_spec, bh_spec,         # Q
                      wh_spec, bh_spec,         # K
                      wh_spec, bh_spec,         # V
                      wo_spec, bo_spec],        # O
            out_specs=[pl.BlockSpec((1, TQ, D), lambda b, qi, h: (b, qi, 0)),
                       pl.BlockSpec((1, 1, TQ, S), lambda b, qi, h: (b, h, qi, 0))],
            scratch_shapes=[pltpu.VMEM((TQ, D), jnp.float32)],
        ),
        compiler_params=pltpu.CompilerParams(
            dimension_semantics=("parallel", "parallel", "arbitrary")),
    )(query, key, value,
      wq_h, bq_h, wk_h, bk_h, wv_h, bv_h, wo_h, bo)
    return out, attn


def _reference(query, key, value, params, n_heads):
    """Pure-JAX reference mirroring the PyTorch forward (eval mode, mask=None)."""
    B, S, D = query.shape
    d_k = D // n_heads

    def lin(x, w, b):
        return x @ w + b[0]

    Q = lin(query, params["wq"], params["bq"]).reshape(B, S, n_heads, d_k).transpose(0, 2, 1, 3)
    K = lin(key, params["wk"], params["bk"]).reshape(B, S, n_heads, d_k).transpose(0, 2, 1, 3)
    V = lin(value, params["wv"], params["bv"]).reshape(B, S, n_heads, d_k).transpose(0, 2, 1, 3)
    scores = jnp.einsum('bhqd,bhkd->bhqk', Q, K) / math.sqrt(d_k)
    attn = jax.nn.softmax(scores, axis=-1)
    ctx = jnp.einsum('bhqk,bhkd->bhqd', attn, V)
    ctx = ctx.transpose(0, 2, 1, 3).reshape(B, S, D)
    out = lin(ctx, params["wo"], params["bo"])
    return out, attn


if __name__ == "__main__":
    B, S, D, H = 2, 8, 32, 4

    key = jax.random.PRNGKey(0)
    keys = jax.random.split(key, 12)

    # Deterministic parameter init (stored pre-transposed: (D_in, D_out)).
    bound = 1.0 / math.sqrt(D)
    def u(k, shape):
        return jax.random.uniform(k, shape, jnp.float32, -bound, bound)

    params = {
        "wq": u(keys[0], (D, D)), "bq": u(keys[1], (1, D)),
        "wk": u(keys[2], (D, D)), "bk": u(keys[3], (1, D)),
        "wv": u(keys[4], (D, D)), "bv": u(keys[5], (1, D)),
        "wo": u(keys[6], (D, D)), "bo": u(keys[7], (1, D)),
    }

    query = jax.random.normal(keys[8], (B, S, D), jnp.float32)
    k_in = jax.random.normal(keys[9], (B, S, D), jnp.float32)
    v_in = jax.random.normal(keys[10], (B, S, D), jnp.float32)

    out, attn = multi_head_attention(query, k_in, v_in, params, H)
    out = jax.block_until_ready(out)
    attn = jax.block_until_ready(attn)

    ref_out, ref_attn = _reference(query, k_in, v_in, params, H)
    assert out.shape == (B, S, D) and attn.shape == (B, H, S, S)
    # 1e-3 tolerance: approx (EUP) reciprocal in the softmax normalization.
    assert jnp.allclose(out, ref_out, atol=1e-3, rtol=1e-3)
    assert jnp.allclose(attn, ref_attn, atol=1e-3, rtol=1e-3)

    print("KERNEL_OK")
</pallas_src>

<mosaic_0001>
module attributes {stable_mosaic.version = 11 : i64} {
  func.func @_mha_kernel(%arg0: i32, %arg1: i32, %arg2: i32, %arg3: memref<1x8x32xf32, #tpu.memory_space<vmem>>, %arg4: memref<1x8x32xf32, #tpu.memory_space<vmem>>, %arg5: memref<1x8x32xf32, #tpu.memory_space<vmem>>, %arg6: memref<1x32x8xf32, #tpu.memory_space<vmem>>, %arg7: memref<1x1x8xf32, #tpu.memory_space<vmem>>, %arg8: memref<1x32x8xf32, #tpu.memory_space<vmem>>, %arg9: memref<1x1x8xf32, #tpu.memory_space<vmem>>, %arg10: memref<1x32x8xf32, #tpu.memory_space<vmem>>, %arg11: memref<1x1x8xf32, #tpu.memory_space<vmem>>, %arg12: memref<1x8x32xf32, #tpu.memory_space<vmem>>, %arg13: memref<1x32xf32, #tpu.memory_space<vmem>>, %arg14: memref<1x8x32xf32, #tpu.memory_space<vmem>>, %arg15: memref<1x1x8x8xf32, #tpu.memory_space<vmem>>, %arg16: memref<8x32xf32, #tpu.memory_space<vmem>>) attributes {dimension_semantics = [#tpu.dimension_semantics<parallel>, #tpu.dimension_semantics<parallel>, #tpu.dimension_semantics<arbitrary>], iteration_bounds = array<i64: 2, 1, 4>, scalar_prefetch = 0 : i64, scratch_operands = 1 : i64, tpu.core_type = #tpu.core_type<tc>, window_params = [{transform_indices = @transform_0, window_bounds = array<i64: 1, 8, 32>}, {transform_indices = @transform_1, window_bounds = array<i64: 1, 8, 32>}, {transform_indices = @transform_2, window_bounds = array<i64: 1, 8, 32>}, {transform_indices = @transform_3, window_bounds = array<i64: 1, 32, 8>}, {transform_indices = @transform_4, window_bounds = array<i64: 1, 1, 8>}, {transform_indices = @transform_5, window_bounds = array<i64: 1, 32, 8>}, {transform_indices = @transform_6, window_bounds = array<i64: 1, 1, 8>}, {transform_indices = @transform_7, window_bounds = array<i64: 1, 32, 8>}, {transform_indices = @transform_8, window_bounds = array<i64: 1, 1, 8>}, {transform_indices = @transform_9, window_bounds = array<i64: 1, 8, 32>}, {pipeline_mode = #tpu.pipeline_mode<synchronous>, transform_indices = @transform_10, window_bounds = array<i64: 1, 32>}, {transform_indices = @transform_11, window_bounds = array<i64: 1, 8, 32>}, {transform_indices = @transform_12, window_bounds = array<i64: 1, 1, 8, 8>}]} {
    %c0 = arith.constant 0 : index
    %c0_0 = arith.constant 0 : index
    %c0_1 = arith.constant 0 : index
    %0 = vector.load %arg3[%c0, %c0_0, %c0_1] : memref<1x8x32xf32, #tpu.memory_space<vmem>>, vector<1x8x32xf32>
    %1 = vector.shape_cast %0 : vector<1x8x32xf32> to vector<8x32xf32>
    %c0_2 = arith.constant 0 : index
    %c0_3 = arith.constant 0 : index
    %c0_4 = arith.constant 0 : index
    %2 = vector.load %arg4[%c0_2, %c0_3, %c0_4] : memref<1x8x32xf32, #tpu.memory_space<vmem>>, vector<1x8x32xf32>
    %3 = vector.shape_cast %2 : vector<1x8x32xf32> to vector<8x32xf32>
    %c0_5 = arith.constant 0 : index
    %c0_6 = arith.constant 0 : index
    %c0_7 = arith.constant 0 : index
    %4 = vector.load %arg5[%c0_5, %c0_6, %c0_7] : memref<1x8x32xf32, #tpu.memory_space<vmem>>, vector<1x8x32xf32>
    %5 = vector.shape_cast %4 : vector<1x8x32xf32> to vector<8x32xf32>
    %c0_8 = arith.constant 0 : index
    %c0_9 = arith.constant 0 : index
    %c0_10 = arith.constant 0 : index
    %6 = vector.load %arg6[%c0_8, %c0_9, %c0_10] : memref<1x32x8xf32, #tpu.memory_space<vmem>>, vector<1x32x8xf32>
    %7 = vector.shape_cast %6 : vector<1x32x8xf32> to vector<32x8xf32>
    %c0_11 = arith.constant 0 : index
    %c0_12 = arith.constant 0 : index
    %c0_13 = arith.constant 0 : index
    %8 = vector.load %arg8[%c0_11, %c0_12, %c0_13] : memref<1x32x8xf32, #tpu.memory_space<vmem>>, vector<1x32x8xf32>
    %9 = vector.shape_cast %8 : vector<1x32x8xf32> to vector<32x8xf32>
    %c0_14 = arith.constant 0 : index
    %c0_15 = arith.constant 0 : index
    %c0_16 = arith.constant 0 : index
    %10 = vector.load %arg10[%c0_14, %c0_15, %c0_16] : memref<1x32x8xf32, #tpu.memory_space<vmem>>, vector<1x32x8xf32>
    %11 = vector.shape_cast %10 : vector<1x32x8xf32> to vector<32x8xf32>
    %c0_17 = arith.constant 0 : index
    %c0_18 = arith.constant 0 : index
    %c0_19 = arith.constant 0 : index
    %12 = vector.load %arg12[%c0_17, %c0_18, %c0_19] : memref<1x8x32xf32, #tpu.memory_space<vmem>>, vector<1x8x32xf32>
    %13 = vector.shape_cast %12 : vector<1x8x32xf32> to vector<8x32xf32>
    %cst = arith.constant dense<0.000000e+00> : vector<8x8xf32>
    %14 = tpu.matmul %1, %7, %cst {dimension_numbers = #tpu.dot_dimension_numbers<[1], [0], [0], [1], [0, 0, 1, 1], [], []>} : vector<8x32xf32>, vector<32x8xf32>, vector<8x8xf32> -> vector<8x8xf32>
    %c0_20 = arith.constant 0 : index
    %c0_21 = arith.constant 0 : index
    %c0_22 = arith.constant 0 : index
    %15 = vector.load %arg7[%c0_20, %c0_21, %c0_22] : memref<1x1x8xf32, #tpu.memory_space<vmem>>, vector<1x1x8xf32>
    %16 = vector.shape_cast %15 : vector<1x1x8xf32> to vector<1x8xf32>
    %17 = vector.broadcast %16 : vector<1x8xf32> to vector<8x8xf32>
    %18 = arith.addf %14, %17 : vector<8x8xf32>
    %cst_23 = arith.constant 0.353553385 : f32
    %19 = vector.broadcast %cst_23 : f32 to vector<8x8xf32>
    %20 = arith.mulf %18, %19 : vector<8x8xf32>
    %cst_24 = arith.constant dense<0.000000e+00> : vector<8x8xf32>
    %21 = tpu.matmul %3, %9, %cst_24 {dimension_numbers = #tpu.dot_dimension_numbers<[1], [0], [0], [1], [0, 0, 1, 1], [], []>} : vector<8x32xf32>, vector<32x8xf32>, vector<8x8xf32> -> vector<8x8xf32>
    %c0_25 = arith.constant 0 : index
    %c0_26 = arith.constant 0 : index
    %c0_27 = arith.constant 0 : index
    %22 = vector.load %arg9[%c0_25, %c0_26, %c0_27] : memref<1x1x8xf32, #tpu.memory_space<vmem>>, vector<1x1x8xf32>
    %23 = vector.shape_cast %22 : vector<1x1x8xf32> to vector<1x8xf32>
    %24 = vector.broadcast %23 : vector<1x8xf32> to vector<8x8xf32>
    %25 = arith.addf %21, %24 : vector<8x8xf32>
    %cst_28 = arith.constant dense<0.000000e+00> : vector<8x8xf32>
    %26 = tpu.matmul %5, %11, %cst_28 {dimension_numbers = #tpu.dot_dimension_numbers<[1], [0], [0], [1], [0, 0, 1, 1], [], []>} : vector<8x32xf32>, vector<32x8xf32>, vector<8x8xf32> -> vector<8x8xf32>
    %c0_29 = arith.constant 0 : index
    %c0_30 = arith.constant 0 : index
    %c0_31 = arith.constant 0 : index
    %27 = vector.load %arg11[%c0_29, %c0_30, %c0_31] : memref<1x1x8xf32, #tpu.memory_space<vmem>>, vector<1x1x8xf32>
    %28 = vector.shape_cast %27 : vector<1x1x8xf32> to vector<1x8xf32>
    %29 = vector.broadcast %28 : vector<1x8xf32> to vector<8x8xf32>
    %30 = arith.addf %26, %29 : vector<8x8xf32>
    %cst_32 = arith.constant dense<0.000000e+00> : vector<8x8xf32>
    %31 = tpu.matmul %20, %25, %cst_32 {dimension_numbers = #tpu.dot_dimension_numbers<[1], [1], [0], [0], [0, 0, 1, 0], [], []>} : vector<8x8xf32>, vector<8x8xf32>, vector<8x8xf32> -> vector<8x8xf32>
    %cst_33 = arith.constant dense<0xFF800000> : vector<8xf32>
    %32 = vector.multi_reduction <maximumf>, %31, %cst_33 [1] : vector<8x8xf32> to vector<8xf32>
    %33 = vector.shape_cast %32 : vector<8xf32> to vector<8x1xf32>
    %34 = vector.broadcast %33 : vector<8x1xf32> to vector<8x8xf32>
    %35 = arith.subf %31, %34 : vector<8x8xf32>
    %36 = math.exp %35 : vector<8x8xf32>
    %cst_34 = arith.constant dense<0.000000e+00> : vector<8xf32>
    %37 = vector.multi_reduction <add>, %36, %cst_34 [1] : vector<8x8xf32> to vector<8xf32>
    %38 = vector.shape_cast %37 : vector<8xf32> to vector<8x1xf32>
    %39 = tpu.reciprocal %38 {approx = true} : vector<8x1xf32> -> vector<8x1xf32>
    %40 = vector.broadcast %39 : vector<8x1xf32> to vector<8x8xf32>
    %41 = arith.mulf %36, %40 : vector<8x8xf32>
    %c0_35 = arith.constant 0 : index
    %c0_36 = arith.constant 0 : index
    %c0_37 = arith.constant 0 : index
    %c0_38 = arith.constant 0 : index
    %42 = vector.load %arg15[%c0_35, %c0_36, %c0_37, %c0_38] : memref<1x1x8x8xf32, #tpu.memory_space<vmem>>, vector<1x1x8x8xf32>
    %43 = vector.shape_cast %42 : vector<1x1x8x8xf32> to vector<8x8xf32>
    %44 = vector.shape_cast %41 : vector<8x8xf32> to vector<1x1x8x8xf32>
    tpu.vector_store %arg15[%c0_35, %c0_36, %c0_37, %c0_38], %44 {strides = array<i32>} : memref<1x1x8x8xf32, #tpu.memory_space<vmem>>, vector<1x1x8x8xf32>,
    %cst_39 = arith.constant dense<0.000000e+00> : vector<8x8xf32>
    %45 = tpu.matmul %41, %30, %cst_39 {dimension_numbers = #tpu.dot_dimension_numbers<[1], [0], [0], [1], [0, 0, 1, 1], [], []>} : vector<8x8xf32>, vector<8x8xf32>, vector<8x8xf32> -> vector<8x8xf32>
    %cst_40 = arith.constant dense<0.000000e+00> : vector<8x32xf32>
    %46 = tpu.matmul %45, %13, %cst_40 {dimension_numbers = #tpu.dot_dimension_numbers<[1], [0], [0], [1], [0, 0, 1, 1], [], []>} : vector<8x8xf32>, vector<8x32xf32>, vector<8x32xf32> -> vector<8x32xf32>
    %c0_i32 = arith.constant 0 : i32
    %47 = arith.cmpi eq, %arg2, %c0_i32 : i32
    %48 = arith.extui %47 : i1 to i32
    %c0_i32_41 = arith.constant 0 : i32
    %49 = arith.cmpi ne, %48, %c0_i32_41 : i32
    scf.if %49 {
      %cst_47 = arith.constant 0.000000e+00 : f32
      %56 = vector.broadcast %cst_47 : f32 to vector<8x32xf32>
      %c0_48 = arith.constant 0 : index
      %c0_49 = arith.constant 0 : index
      %57 = vector.load %arg16[%c0_48, %c0_49] : memref<8x32xf32, #tpu.memory_space<vmem>>, vector<8x32xf32>
      tpu.vector_store %arg16[%c0_48, %c0_49], %56 {strides = array<i32>} : memref<8x32xf32, #tpu.memory_space<vmem>>, vector<8x32xf32>,
    } else {
    }
    %c0_42 = arith.constant 0 : index
    %c0_43 = arith.constant 0 : index
    %50 = vector.load %arg16[%c0_42, %c0_43] : memref<8x32xf32, #tpu.memory_space<vmem>>, vector<8x32xf32>
    %51 = arith.addf %50, %46 : vector<8x32xf32>
    %c0_44 = arith.constant 0 : index
    %c0_45 = arith.constant 0 : index
    %52 = vector.load %arg16[%c0_44, %c0_45] : memref<8x32xf32, #tpu.memory_space<vmem>>, vector<8x32xf32>
    tpu.vector_store %arg16[%c0_44, %c0_45], %51 {strides = array<i32>} : memref<8x32xf32, #tpu.memory_space<vmem>>, vector<8x32xf32>,
    %c3_i32 = arith.constant 3 : i32
    %53 = arith.cmpi eq, %arg2, %c3_i32 : i32
    %54 = arith.extui %53 : i1 to i32
    %c0_i32_46 = arith.constant 0 : i32
    %55 = arith.cmpi ne, %54, %c0_i32_46 : i32
    scf.if %55 {
      %c0_47 = arith.constant 0 : index
      %c0_48 = arith.constant 0 : index
      %56 = vector.load %arg16[%c0_47, %c0_48] : memref<8x32xf32, #tpu.memory_space<vmem>>, vector<8x32xf32>
      %c0_49 = arith.constant 0 : index
      %c0_50 = arith.constant 0 : index
      %57 = vector.load %arg13[%c0_49, %c0_50] : memref<1x32xf32, #tpu.memory_space<vmem>>, vector<1x32xf32>
      %58 = vector.broadcast %57 : vector<1x32xf32> to vector<8x32xf32>
      %59 = arith.addf %56, %58 : vector<8x32xf32>
      %c0_51 = arith.constant 0 : index
      %c0_52 = arith.constant 0 : index
      %c0_53 = arith.constant 0 : index
      %60 = vector.load %arg14[%c0_51, %c0_52, %c0_53] : memref<1x8x32xf32, #tpu.memory_space<vmem>>, vector<1x8x32xf32>
      %61 = vector.shape_cast %60 : vector<1x8x32xf32> to vector<8x32xf32>
      %62 = vector.shape_cast %59 : vector<8x32xf32> to vector<1x8x32xf32>
      tpu.vector_store %arg14[%c0_51, %c0_52, %c0_53], %62 {strides = array<i32>} : memref<1x8x32xf32, #tpu.memory_space<vmem>>, vector<1x8x32xf32>,
    } else {
    }
    return
  }
  func.func @transform_0(%arg0: i32, %arg1: i32, %arg2: i32) -> (i32, i32, i32) {
    %c0_i32 = arith.constant 0 : i32
    %c0_i32_0 = arith.constant 0 : i32
    return %arg0, %arg1, %c0_i32 : i32, i32, i32
  }
  func.func @transform_1(%arg0: i32, %arg1: i32, %arg2: i32) -> (i32, i32, i32) {
    %c0_i32 = arith.constant 0 : i32
    %c0_i32_0 = arith.constant 0 : i32
    %c0_i32_1 = arith.constant 0 : i32
    return %arg0, %c0_i32, %c0_i32_0 : i32, i32, i32
  }
  func.func @transform_2(%arg0: i32, %arg1: i32, %arg2: i32) -> (i32, i32, i32) {
    %c0_i32 = arith.constant 0 : i32
    %c0_i32_0 = arith.constant 0 : i32
    %c0_i32_1 = arith.constant 0 : i32
    return %arg0, %c0_i32, %c0_i32_0 : i32, i32, i32
  }
  func.func @transform_3(%arg0: i32, %arg1: i32, %arg2: i32) -> (i32, i32, i32) {
    %c0_i32 = arith.constant 0 : i32
    %c0_i32_0 = arith.constant 0 : i32
    %c0_i32_1 = arith.constant 0 : i32
    return %arg2, %c0_i32, %c0_i32_0 : i32, i32, i32
  }
  func.func @transform_4(%arg0: i32, %arg1: i32, %arg2: i32) -> (i32, i32, i32) {
    %c0_i32 = arith.constant 0 : i32
    %c0_i32_0 = arith.constant 0 : i32
    %c0_i32_1 = arith.constant 0 : i32
    return %arg2, %c0_i32, %c0_i32_0 : i32, i32, i32
  }
  func.func @transform_5(%arg0: i32, %arg1: i32, %arg2: i32) -> (i32, i32, i32) {
    %c0_i32 = arith.constant 0 : i32
    %c0_i32_0 = arith.constant 0 : i32
    %c0_i32_1 = arith.constant 0 : i32
    return %arg2, %c0_i32, %c0_i32_0 : i32, i32, i32
  }
  func.func @transform_6(%arg0: i32, %arg1: i32, %arg2: i32) -> (i32, i32, i32) {
    %c0_i32 = arith.constant 0 : i32
    %c0_i32_0 = arith.constant 0 : i32
    %c0_i32_1 = arith.constant 0 : i32
    return %arg2, %c0_i32, %c0_i32_0 : i32, i32, i32
  }
  func.func @transform_7(%arg0: i32, %arg1: i32, %arg2: i32) -> (i32, i32, i32) {
    %c0_i32 = arith.constant 0 : i32
    %c0_i32_0 = arith.constant 0 : i32
    %c0_i32_1 = arith.constant 0 : i32
    return %arg2, %c0_i32, %c0_i32_0 : i32, i32, i32
  }
  func.func @transform_8(%arg0: i32, %arg1: i32, %arg2: i32) -> (i32, i32, i32) {
    %c0_i32 = arith.constant 0 : i32
    %c0_i32_0 = arith.constant 0 : i32
    %c0_i32_1 = arith.constant 0 : i32
    return %arg2, %c0_i32, %c0_i32_0 : i32, i32, i32
  }
  func.func @transform_9(%arg0: i32, %arg1: i32, %arg2: i32) -> (i32, i32, i32) {
    %c0_i32 = arith.constant 0 : i32
    %c0_i32_0 = arith.constant 0 : i32
    %c0_i32_1 = arith.constant 0 : i32
    return %arg2, %c0_i32, %c0_i32_0 : i32, i32, i32
  }
  func.func @transform_10(%arg0: i32, %arg1: i32, %arg2: i32) -> (i32, i32) {
    %c0_i32 = arith.constant 0 : i32
    %c0_i32_0 = arith.constant 0 : i32
    %c0_i32_1 = arith.constant 0 : i32
    return %c0_i32, %c0_i32_0 : i32, i32
  }
  func.func @transform_11(%arg0: i32, %arg1: i32, %arg2: i32) -> (i32, i32, i32) {
    %c0_i32 = arith.constant 0 : i32
    %c0_i32_0 = arith.constant 0 : i32
    return %arg0, %arg1, %c0_i32 : i32, i32, i32
  }
  func.func @transform_12(%arg0: i32, %arg1: i32, %arg2: i32) -> (i32, i32, i32, i32) {
    %c0_i32 = arith.constant 0 : i32
    %c0_i32_0 = arith.constant 0 : i32
    return %arg0, %arg2, %arg1, %c0_i32 : i32, i32, i32, i32
  }
}

</mosaic_0001>

<llo_original>
// kernel: tpu_custom_call.1
$region0: #{tpu_custom_call.1}
  #allocation0 [shape = 'u32[]', space=smem, size = 0x4, offset = 0x4, fixed_abs, tag = 'smem constant byte address 0x4 - core index']
  #allocation1 [shape = 'u32[144,128]{1,0:T(1,128)}', space=vmem, size = 0x12000, scoped, tag = 'internal scratch']
  #allocation2 [shape = 'f32[8,32]{1,0:T(8,128)}', space=vmem, size = 0x1000, scoped, tag = 'scratch operand']
  %s0 = inlined_call_operand.vmem [shape: f32[2,8,32], index: 0, kind: input, shape index: {}]
  %s1 = inlined_call_operand.vmem [shape: f32[2,8,32], index: 1, kind: input, shape index: {}]
  %s2 = inlined_call_operand.vmem [shape: f32[2,8,32], index: 2, kind: input, shape index: {}]
  %s3 = inlined_call_operand.vmem [shape: f32[4,32,8], index: 3, kind: input, shape index: {}]
  %s4 = inlined_call_operand.vmem [shape: f32[4,1,8], index: 4, kind: input, shape index: {}]
  %s5 = inlined_call_operand.vmem [shape: f32[4,32,8], index: 5, kind: input, shape index: {}]
  %s6 = inlined_call_operand.vmem [shape: f32[4,1,8], index: 6, kind: input, shape index: {}]
  %s7 = inlined_call_operand.vmem [shape: f32[4,32,8], index: 7, kind: input, shape index: {}]
  %s8 = inlined_call_operand.vmem [shape: f32[4,1,8], index: 8, kind: input, shape index: {}]
  %s9 = inlined_call_operand.vmem [shape: f32[4,8,32], index: 9, kind: input, shape index: {}]
  %s10 = inlined_call_operand.vmem [shape: f32[1,32], index: 10, kind: input, shape index: {}]
  %s11 = inlined_call_operand.hbm [shape: f32[2,8,32], index: 11, kind: output, shape index: {0}]
  %s12 = inlined_call_operand.hbm [shape: f32[2,4,8,8], index: 12, kind: output, shape index: {1}]
  %13 = xla_tuple %s11, %s12
  %s14 = sld [smem:[#allocation0]]
  $region93: #{tpu_custom_call.1} parent=0
    _
  %s16 = ssub.s32 1, %s14
  %s17 = scalar_select 0, %s16, %s14
  $region1: #{tpu_custom_call.1} parent=0
    #allocation3 [shape = 'u8[8192]{0}', space=vmem, size = 0x2000, scoped, tag = 'output window, operand 0']
    #allocation4 [shape = 's32[2]{0}', space=sflag, size = 0x8, scoped, tag = 'scoped memory for tpu_custom_call.1']
    #allocation5 [shape = 'u8[8192]{0}', space=vmem, size = 0x2000, scoped, tag = 'output window, operand 1']
    #allocation6 [shape = 's32[2]{0}', space=sflag, size = 0x8, scoped, tag = 'scoped memory for tpu_custom_call.1']
    %18 = vsyncpa [#allocation4], 0
    %s19 = scalar_lea.sflag [#allocation4], 1
    %20 = vsyncpa %s19, 0
    %21 = vsyncpa [#allocation6], 0
    %s22 = scalar_lea.sflag [#allocation6], 1
    %23 = vsyncpa %s22, 0
    loop: start=0, step=1, limit=10
    $region2: #{tpu_custom_call.1} parent=1 // loop_pre_header
      _
    $region3: #{tpu_custom_call.1} parent=1 // loop_header
      %s25 = sphi 0, %s29
      %p26 = scmp.ge.s32.totalorder %s25, 10
      %s32 = sphi 0, %s51
      %s33 = sphi 0, %s47
      %s34 = sphi 0, %s43
      %s35 = sphi 0, %s32
      %s36 = sphi 0, %s33
      %s37 = sphi 0, %s34
      %s38 = sphi 0, %s35
      %s39 = sphi 0, %s36
      %s40 = sphi 0, %s37
      %s56 = sphi 0, %s58
      %s59 = sphi 0, %s56
      %s60 = sphi 0, %s59
      %s76 = sphi 0, %s60
      %s82 = sphi 0, %s84
      %s85 = sphi 0, %s82
      %s86 = sphi 0, %s85
      %s102 = sphi 0, %s86
      %s108 = sphi 0, %s110
      %s111 = sphi 0, %s108
      %s112 = sphi 0, %s111
      %s128 = sphi 0, %s112
      %s134 = sphi 0, %s136
      %s137 = sphi 0, %s134
      %s138 = sphi 0, %s137
      %s154 = sphi 0, %s138
      %s160 = sphi 0, %s162
      %s163 = sphi 0, %s160
      %s164 = sphi 0, %s163
      %s180 = sphi 0, %s164
      %s186 = sphi 0, %s188
      %s189 = sphi 0, %s186
      %s190 = sphi 0, %s189
      %s206 = sphi 0, %s190
      %s212 = sphi 0, %s214
      %s215 = sphi 0, %s212
      %s216 = sphi 0, %s215
      %s232 = sphi 0, %s216
      %s238 = sphi 0, %s240
      %s241 = sphi 0, %s238
      %s242 = sphi 0, %s241
      %s258 = sphi 0, %s242
      %s264 = sphi 0, %s266
      %s267 = sphi 0, %s264
      %s268 = sphi 0, %s267
      %s284 = sphi 0, %s268
      %s290 = sphi 0, %s292
      %s293 = sphi 0, %s290
      %s294 = sphi 0, %s293
      %s310 = sphi 0, %s294
      %s314 = sphi 0, %s314
      %s316 = sphi 0, %s314
      %s317 = sphi 0, %s316
      %s331 = sphi 0, %s317
      %s339 = sphi 0, %s341
      %s342 = sphi 0, %s339
      %s343 = sphi 0, %s342
      %s359 = sphi 0, %s343
      %s369 = sphi 0, %s371
      %s372 = sphi 0, %s369
      %s373 = sphi 0, %s372
      %s389 = sphi 0, %s373
    $region4: #{tpu_custom_call.1} parent=1 // loop_header_branch
      %28 = sbr.rel (%p26) target = $region8
    $region5: #{tpu_custom_call.1} parent=1 // loop_body
      %s30 = ssub.s32 %s25, 1
      %s31 = ssub.s32 %s25, 2
      %s41 = sadd.s32 1, %s34
      %p42 = scmp.ge.s32.totalorder %s41, 4
      %s43 = scalar_select %p42, 0, %s41
      %s44 = sadd.s32 1, %s33
      %s45 = scalar_select %p42, %s44, %s33
      %p46 = scmp.ge.s32.totalorder %s45, 1
      %s47 = scalar_select %p46, 0, %s45
      %s48 = sadd.s32 1, %s32
      %s49 = scalar_select %p46, %s48, %s32
      %p50 = scmp.ge.s32.totalorder %s49, 2
      %s51 = scalar_select %p50, 0, %s49
      %s52 = ssub.s32 %s32, %s51
      %s53 = ssub.s32 %s33, %s47
      %s54 = sor.u32 %s52, %s53
      %p55 = scmp.eq.s32.totalorder %s54, 0
      %s57 = sadd.s32 %s56, 1
      %s58 = scalar_select %p55, %s56, %s57
      %p61 = pneg %p55
      %p62 = scmp.eq.s32.totalorder %s25, 7
      %p63 = por %p61, %p62
      %p64 = scmp.ne.s32.totalorder %s56, %s59
      %p65 = scmp.eq.s32.totalorder %s25, 0
      %p66 = por %p64, %p65
      %p67 = scmp.ne.s32.totalorder %s56, %s59
      %p68 = scmp.eq.s32.totalorder %s30, 7
      %p69 = por %p67, %p68
      %p70 = scmp.ne.s32.totalorder %s59, %s60
      %p71 = scmp.eq.s32.totalorder %s30, 0
      %p72 = por %p70, %p71
      %p73 = scmp.ne.s32.totalorder %s59, %s60
      %p74 = scmp.eq.s32.totalorder %s31, 7
      %p75 = por %p73, %p74
      %p77 = scmp.ne.s32.totalorder %s60, %s76
      %p78 = scmp.eq.s32.totalorder %s31, 0
      %p79 = por %p77, %p78
      %s80 = ssub.s32 %s32, %s51
      %p81 = scmp.eq.s32.totalorder %s80, 0
      %s83 = sadd.s32 %s82, 1
      %s84 = scalar_select %p81, %s82, %s83
      %p87 = pneg %p81
      %p88 = scmp.eq.s32.totalorder %s25, 7
      %p89 = por %p87, %p88
      %p90 = scmp.ne.s32.totalorder %s82, %s85
      %p91 = scmp.eq.s32.totalorder %s25, 0
      %p92 = por %p90, %p91
      %p93 = scmp.ne.s32.totalorder %s82, %s85
      %p94 = scmp.eq.s32.totalorder %s30, 7
      %p95 = por %p93, %p94
      %p96 = scmp.ne.s32.totalorder %s85, %s86
      %p97 = scmp.eq.s32.totalorder %s30, 0
      %p98 = por %p96, %p97
      %p99 = scmp.ne.s32.totalorder %s85, %s86
      %p100 = scmp.eq.s32.totalorder %s31, 7
      %p101 = por %p99, %p100
      %p103 = scmp.ne.s32.totalorder %s86, %s102
      %p104 = scmp.eq.s32.totalorder %s31, 0
      %p105 = por %p103, %p104
      %s106 = ssub.s32 %s32, %s51
      %p107 = scmp.eq.s32.totalorder %s106, 0
      %s109 = sadd.s32 %s108, 1
      %s110 = scalar_select %p107, %s108, %s109
      %p113 = pneg %p107
      %p114 = scmp.eq.s32.totalorder %s25, 7
      %p115 = por %p113, %p114
      %p116 = scmp.ne.s32.totalorder %s108, %s111
      %p117 = scmp.eq.s32.totalorder %s25, 0
      %p118 = por %p116, %p117
      %p119 = scmp.ne.s32.totalorder %s108, %s111
      %p120 = scmp.eq.s32.totalorder %s30, 7
      %p121 = por %p119, %p120
      %p122 = scmp.ne.s32.totalorder %s111, %s112
      %p123 = scmp.eq.s32.totalorder %s30, 0
      %p124 = por %p122, %p123
      %p125 = scmp.ne.s32.totalorder %s111, %s112
      %p126 = scmp.eq.s32.totalorder %s31, 7
      %p127 = por %p125, %p126
      %p129 = scmp.ne.s32.totalorder %s112, %s128
      %p130 = scmp.eq.s32.totalorder %s31, 0
      %p131 = por %p129, %p130
      %s132 = ssub.s32 %s34, %s43
      %p133 = scmp.eq.s32.totalorder %s132, 0
      %s135 = sadd.s32 %s134, 1
      %s136 = scalar_select %p133, %s134, %s135
      %p139 = pneg %p133
      %p140 = scmp.eq.s32.totalorder %s25, 7
      %p141 = por %p139, %p140
      %p142 = scmp.ne.s32.totalorder %s134, %s137
      %p143 = scmp.eq.s32.totalorder %s25, 0
      %p144 = por %p142, %p143
      %p145 = scmp.ne.s32.totalorder %s134, %s137
      %p146 = scmp.eq.s32.totalorder %s30, 7
      %p147 = por %p145, %p146
      %p148 = scmp.ne.s32.totalorder %s137, %s138
      %p149 = scmp.eq.s32.totalorder %s30, 0
      %p150 = por %p148, %p149
      %p151 = scmp.ne.s32.totalorder %s137, %s138
      %p152 = scmp.eq.s32.totalorder %s31, 7
      %p153 = por %p151, %p152
      %p155 = scmp.ne.s32.totalorder %s138, %s154
      %p156 = scmp.eq.s32.totalorder %s31, 0
      %p157 = por %p155, %p156
      %s158 = ssub.s32 %s34, %s43
      %p159 = scmp.eq.s32.totalorder %s158, 0
      %s161 = sadd.s32 %s160, 1
      %s162 = scalar_select %p159, %s160, %s161
      %p165 = pneg %p159
      %p166 = scmp.eq.s32.totalorder %s25, 7
      %p167 = por %p165, %p166
      %p168 = scmp.ne.s32.totalorder %s160, %s163
      %p169 = scmp.eq.s32.totalorder %s25, 0
      %p170 = por %p168, %p169
      %p171 = scmp.ne.s32.totalorder %s160, %s163
      %p172 = scmp.eq.s32.totalorder %s30, 7
      %p173 = por %p171, %p172
      %p174 = scmp.ne.s32.totalorder %s163, %s164
      %p175 = scmp.eq.s32.totalorder %s30, 0
      %p176 = por %p174, %p175
      %p177 = scmp.ne.s32.totalorder %s163, %s164
      %p178 = scmp.eq.s32.totalorder %s31, 7
      %p179 = por %p177, %p178
      %p181 = scmp.ne.s32.totalorder %s164, %s180
      %p182 = scmp.eq.s32.totalorder %s31, 0
      %p183 = por %p181, %p182
      %s184 = ssub.s32 %s34, %s43
      %p185 = scmp.eq.s32.totalorder %s184, 0
      %s187 = sadd.s32 %s186, 1
      %s188 = scalar_select %p185, %s186, %s187
      %p191 = pneg %p185
      %p192 = scmp.eq.s32.totalorder %s25, 7
      %p193 = por %p191, %p192
      %p194 = scmp.ne.s32.totalorder %s186, %s189
      %p195 = scmp.eq.s32.totalorder %s25, 0
      %p196 = por %p194, %p195
      %p197 = scmp.ne.s32.totalorder %s186, %s189
      %p198 = scmp.eq.s32.totalorder %s30, 7
      %p199 = por %p197, %p198
      %p200 = scmp.ne.s32.totalorder %s189, %s190
      %p201 = scmp.eq.s32.totalorder %s30, 0
      %p202 = por %p200, %p201
      %p203 = scmp.ne.s32.totalorder %s189, %s190
      %p204 = scmp.eq.s32.totalorder %s31, 7
      %p205 = por %p203, %p204
      %p207 = scmp.ne.s32.totalorder %s190, %s206
      %p208 = scmp.eq.s32.totalorder %s31, 0
      %p209 = por %p207, %p208
      %s210 = ssub.s32 %s34, %s43
      %p211 = scmp.eq.s32.totalorder %s210, 0
      %s213 = sadd.s32 %s212, 1
      %s214 = scalar_select %p211, %s212, %s213
      %p217 = pneg %p211
      %p218 = scmp.eq.s32.totalorder %s25, 7
      %p219 = por %p217, %p218
      %p220 = scmp.ne.s32.totalorder %s212, %s215
      %p221 = scmp.eq.s32.totalorder %s25, 0
      %p222 = por %p220, %p221
      %p223 = scmp.ne.s32.totalorder %s212, %s215
      %p224 = scmp.eq.s32.totalorder %s30, 7
      %p225 = por %p223, %p224
      %p226 = scmp.ne.s32.totalorder %s215, %s216
      %p227 = scmp.eq.s32.totalorder %s30, 0
      %p228 = por %p226, %p227
      %p229 = scmp.ne.s32.totalorder %s215, %s216
      %p230 = scmp.eq.s32.totalorder %s31, 7
      %p231 = por %p229, %p230
      %p233 = scmp.ne.s32.totalorder %s216, %s232
      %p234 = scmp.eq.s32.totalorder %s31, 0
      %p235 = por %p233, %p234
      %s236 = ssub.s32 %s34, %s43
      %p237 = scmp.eq.s32.totalorder %s236, 0
      %s239 = sadd.s32 %s238, 1
      %s240 = scalar_select %p237, %s238, %s239
      %p243 = pneg %p237
      %p244 = scmp.eq.s32.totalorder %s25, 7
      %p245 = por %p243, %p244
      %p246 = scmp.ne.s32.totalorder %s238, %s241
      %p247 = scmp.eq.s32.totalorder %s25, 0
      %p248 = por %p246, %p247
      %p249 = scmp.ne.s32.totalorder %s238, %s241
      %p250 = scmp.eq.s32.totalorder %s30, 7
      %p251 = por %p249, %p250
      %p252 = scmp.ne.s32.totalorder %s241, %s242
      %p253 = scmp.eq.s32.totalorder %s30, 0
      %p254 = por %p252, %p253
      %p255 = scmp.ne.s32.totalorder %s241, %s242
      %p256 = scmp.eq.s32.totalorder %s31, 7
      %p257 = por %p255, %p256
      %p259 = scmp.ne.s32.totalorder %s242, %s258
      %p260 = scmp.eq.s32.totalorder %s31, 0
      %p261 = por %p259, %p260
      %s262 = ssub.s32 %s34, %s43
      %p263 = scmp.eq.s32.totalorder %s262, 0
      %s265 = sadd.s32 %s264, 1
      %s266 = scalar_select %p263, %s264, %s265
      %p269 = pneg %p263
      %p270 = scmp.eq.s32.totalorder %s25, 7
      %p271 = por %p269, %p270
      %p272 = scmp.ne.s32.totalorder %s264, %s267
      %p273 = scmp.eq.s32.totalorder %s25, 0
      %p274 = por %p272, %p273
      %p275 = scmp.ne.s32.totalorder %s264, %s267
      %p276 = scmp.eq.s32.totalorder %s30, 7
      %p277 = por %p275, %p276
      %p278 = scmp.ne.s32.totalorder %s267, %s268
      %p279 = scmp.eq.s32.totalorder %s30, 0
      %p280 = por %p278, %p279
      %p281 = scmp.ne.s32.totalorder %s267, %s268
      %p282 = scmp.eq.s32.totalorder %s31, 7
      %p283 = por %p281, %p282
      %p285 = scmp.ne.s32.totalorder %s268, %s284
      %p286 = scmp.eq.s32.totalorder %s31, 0
      %p287 = por %p285, %p286
      %s288 = ssub.s32 %s34, %s43
      %p289 = scmp.eq.s32.totalorder %s288, 0
      %s291 = sadd.s32 %s290, 1
      %s292 = scalar_select %p289, %s290, %s291
      %p295 = pneg %p289
      %p296 = scmp.eq.s32.totalorder %s25, 7
      %p297 = por %p295, %p296
      %p298 = scmp.ne.s32.totalorder %s290, %s293
      %p299 = scmp.eq.s32.totalorder %s25, 0
      %p300 = por %p298, %p299
      %p301 = scmp.ne.s32.totalorder %s290, %s293
      %p302 = scmp.eq.s32.totalorder %s30, 7
      %p303 = por %p301, %p302
      %p304 = scmp.ne.s32.totalorder %s293, %s294
      %p305 = scmp.eq.s32.totalorder %s30, 0
      %p306 = por %p304, %p305
      %p307 = scmp.ne.s32.totalorder %s293, %s294
      %p308 = scmp.eq.s32.totalorder %s31, 7
      %p309 = por %p307, %p308
      %p311 = scmp.ne.s32.totalorder %s294, %s310
      %p312 = scmp.eq.s32.totalorder %s31, 0
      %p313 = por %p311, %p312
      %s315 = sadd.s32 %s314, 1
      %p318 = scmp.eq.s32.totalorder %s25, 7
      %p319 = scmp.ne.s32.totalorder %s314, %s316
      %p320 = scmp.eq.s32.totalorder %s25, 0
      %p321 = por %p319, %p320
      %p322 = scmp.ne.s32.totalorder %s314, %s316
      %p323 = scmp.eq.s32.totalorder %s30, 7
      %p324 = por %p322, %p323
      %p325 = scmp.ne.s32.totalorder %s316, %s317
      %p326 = scmp.eq.s32.totalorder %s30, 0
      %p327 = por %p325, %p326
      %p328 = scmp.ne.s32.totalorder %s316, %s317
      %p329 = scmp.eq.s32.totalorder %s31, 7
      %p330 = por %p328, %p329
      %p332 = scmp.ne.s32.totalorder %s317, %s331
      %p333 = scmp.eq.s32.totalorder %s31, 0
      %p334 = por %p332, %p333
      %s335 = ssub.s32 %s32, %s51
      %s336 = ssub.s32 %s33, %s47
      %s337 = sor.u32 %s335, %s336
      %p338 = scmp.eq.s32.totalorder %s337, 0
      %s340 = sadd.s32 %s339, 1
      %s341 = scalar_select %p338, %s339, %s340
      %p344 = pneg %p338
      %p345 = scmp.eq.s32.totalorder %s25, 7
      %p346 = por %p344, %p345
      %p347 = scmp.ne.s32.totalorder %s339, %s342
      %p348 = scmp.eq.s32.totalorder %s25, 0
      %p349 = por %p347, %p348
      %p350 = scmp.ne.s32.totalorder %s339, %s342
      %p351 = scmp.eq.s32.totalorder %s30, 7
      %p352 = por %p350, %p351
      %p353 = scmp.ne.s32.totalorder %s342, %s343
      %p354 = scmp.eq.s32.totalorder %s30, 0
      %p355 = por %p353, %p354
      %p356 = scmp.ne.s32.totalorder %s342, %s343
      %p357 = scmp.eq.s32.totalorder %s31, 7
      %p358 = por %p356, %p357
      %p360 = scmp.ne.s32.totalorder %s343, %s359
      %p361 = scmp.eq.s32.totalorder %s31, 0
      %p362 = por %p360, %p361
      %s363 = ssub.s32 %s32, %s51
      %s364 = ssub.s32 %s34, %s43
      %s365 = sor.u32 %s363, %s364
      %s366 = ssub.s32 %s33, %s47
      %s367 = sor.u32 %s365, %s366
      %p368 = scmp.eq.s32.totalorder %s367, 0
      %s370 = sadd.s32 %s369, 1
      %s371 = scalar_select %p368, %s369, %s370
      %p374 = pneg %p368
      %p375 = scmp.eq.s32.totalorder %s25, 7
      %p376 = por %p374, %p375
      %p377 = scmp.ne.s32.totalorder %s369, %s372
      %p378 = scmp.eq.s32.totalorder %s25, 0
      %p379 = por %p377, %p378
      %p380 = scmp.ne.s32.totalorder %s369, %s372
      %p381 = scmp.eq.s32.totalorder %s30, 7
      %p382 = por %p380, %p381
      %p383 = scmp.ne.s32.totalorder %s372, %s373
      %p384 = scmp.eq.s32.totalorder %s30, 0
      %p385 = por %p383, %p384
      %p386 = scmp.ne.s32.totalorder %s372, %s373
      %p387 = scmp.eq.s32.totalorder %s31, 7
      %p388 = por %p386, %p387
      %p390 = scmp.ne.s32.totalorder %s373, %s389
      %p391 = scmp.eq.s32.totalorder %s31, 0
      %p392 = por %p390, %p391
      %p393 = scmp.le.s32.totalorder 1, %s25
      %p394 = scmp.lt.s32.totalorder %s25, 9
      %p395 = pnand %p393, %p394
      %p396 = pneg %p395
      // Predicated region
      $region9: #{tpu_custom_call.1} parent=5 // pred_check
        _
      $region10: #{tpu_custom_call.1} parent=5 // pred_check_branch
        %398 = sbr.rel (%p395) target = $region12
      $region11: #{tpu_custom_call.1} parent=5 // pred_region
        %s399 = ssub.s32 %s25, 1
        // Predicated region
        $region13: #{tpu_custom_call.1} parent=11 // pred_check
          %p400 = pneg %p327
        $region14: #{tpu_custom_call.1} parent=11 // pred_check_branch
          %402 = sbr.rel (%p400) target = $region16
        $region15: #{tpu_custom_call.1} parent=11 // pred_region
          _
        $region16: #{tpu_custom_call.1} parent=11 // pred_fallthru
          _
      $region12: #{tpu_custom_call.1} parent=5 // pred_fallthru
        _
      %p403 = scmp.lt.s32.totalorder %s25, 8
      // Predicated region
      $region17: #{tpu_custom_call.1} parent=5 // pred_check
        %p404 = pneg %p403
      $region18: #{tpu_custom_call.1} parent=5 // pred_check_branch
        %406 = sbr.rel (%p404) target = $region20
      $region19: #{tpu_custom_call.1} parent=5 // pred_region
        // Predicated region
        $region21: #{tpu_custom_call.1} parent=19 // pred_check
          %p407 = pneg %p66
        $region22: #{tpu_custom_call.1} parent=19 // pred_check_branch
          %409 = sbr.rel (%p407) target = $region24
        $region23: #{tpu_custom_call.1} parent=19 // pred_region
          %p410 = scmp.lt.s32.totalorder %s32, 1
          %s411 = scalar_select %p410, %s32, 1
          %p412 = scmp.lt.s32.totalorder %s33, 0
          %s413 = scalar_select %p412, %s33, 0
          %s414 = sadd.s32 %s413, %s411
          %s415 = smul.addr %s414, 8
          %s416 = scalar_lea.vmem %s0, %s415
        $region24: #{tpu_custom_call.1} parent=19 // pred_fallthru
          _
        // Predicated region
        $region25: #{tpu_custom_call.1} parent=19 // pred_check
          %p417 = pneg %p92
        $region26: #{tpu_custom_call.1} parent=19 // pred_check_branch
          %419 = sbr.rel (%p417) target = $region28
        $region27: #{tpu_custom_call.1} parent=19 // pred_region
          %p420 = scmp.lt.s32.totalorder %s32, 1
          %s421 = scalar_select %p420, %s32, 1
          %s422 = smul.addr %s421, 8
          %s423 = scalar_lea.vmem %s1, %s422
        $region28: #{tpu_custom_call.1} parent=19 // pred_fallthru
          _
        // Predicated region
        $region29: #{tpu_custom_call.1} parent=19 // pred_check
          %p424 = pneg %p118
        $region30: #{tpu_custom_call.1} parent=19 // pred_check_branch
          %426 = sbr.rel (%p424) target = $region32
        $region31: #{tpu_custom_call.1} parent=19 // pred_region
          %p427 = scmp.lt.s32.totalorder %s32, 1
          %s428 = scalar_select %p427, %s32, 1
          %s429 = smul.addr %s428, 8
          %s430 = scalar_lea.vmem %s2, %s429
        $region32: #{tpu_custom_call.1} parent=19 // pred_fallthru
          _
        // Predicated region
        $region33: #{tpu_custom_call.1} parent=19 // pred_check
          %p431 = pneg %p144
        $region34: #{tpu_custom_call.1} parent=19 // pred_check_branch
          %433 = sbr.rel (%p431) target = $region36
        $region35: #{tpu_custom_call.1} parent=19 // pred_region
          %p434 = scmp.lt.s32.totalorder %s34, 3
          %s435 = scalar_select %p434, %s34, 3
          %s436 = smul.addr %s435, 4
          %s437 = smul.addr %s436, 8
          %s438 = scalar_lea.vmem %s3, %s437
        $region36: #{tpu_custom_call.1} parent=19 // pred_fallthru
          _
        // Predicated region
        $region37: #{tpu_custom_call.1} parent=19 // pred_check
          %p439 = pneg %p170
        $region38: #{tpu_custom_call.1} parent=19 // pred_check_branch
          %441 = sbr.rel (%p439) target = $region40
        $region39: #{tpu_custom_call.1} parent=19 // pred_region
          %p442 = scmp.lt.s32.totalorder %s34, 3
          %s443 = scalar_select %p442, %s34, 3
          %s444 = scalar_lea.vmem %s4, %s443
        $region40: #{tpu_custom_call.1} parent=19 // pred_fallthru
          _
        // Predicated region
        $region41: #{tpu_custom_call.1} parent=19 // pred_check
          %p445 = pneg %p196
        $region42: #{tpu_custom_call.1} parent=19 // pred_check_branch
          %447 = sbr.rel (%p445) target = $region44
        $region43: #{tpu_custom_call.1} parent=19 // pred_region
          %p448 = scmp.lt.s32.totalorder %s34, 3
          %s449 = scalar_select %p448, %s34, 3
          %s450 = smul.addr %s449, 4
          %s451 = smul.addr %s450, 8
          %s452 = scalar_lea.vmem %s5, %s451
        $region44: #{tpu_custom_call.1} parent=19 // pred_fallthru
          _
        // Predicated region
        $region45: #{tpu_custom_call.1} parent=19 // pred_check
          %p453 = pneg %p222
        $region46: #{tpu_custom_call.1} parent=19 // pred_check_branch
          %455 = sbr.rel (%p453) target = $region48
        $region47: #{tpu_custom_call.1} parent=19 // pred_region
          %p456 = scmp.lt.s32.totalorder %s34, 3
          %s457 = scalar_select %p456, %s34, 3
          %s458 = scalar_lea.vmem %s6, %s457
        $region48: #{tpu_custom_call.1} parent=19 // pred_fallthru
          _
        // Predicated region
        $region49: #{tpu_custom_call.1} parent=19 // pred_check
          %p459 = pneg %p248
        $region50: #{tpu_custom_call.1} parent=19 // pred_check_branch
          %461 = sbr.rel (%p459) target = $region52
        $region51: #{tpu_custom_call.1} parent=19 // pred_region
          %p462 = scmp.lt.s32.totalorder %s34, 3
          %s463 = scalar_select %p462, %s34, 3
          %s464 = smul.addr %s463, 4
          %s465 = smul.addr %s464, 8
          %s466 = scalar_lea.vmem %s7, %s465
        $region52: #{tpu_custom_call.1} parent=19 // pred_fallthru
          _
        // Predicated region
        $region53: #{tpu_custom_call.1} parent=19 // pred_check
          %p467 = pneg %p274
        $region54: #{tpu_custom_call.1} parent=19 // pred_check_branch
          %469 = sbr.rel (%p467) target = $region56
        $region55: #{tpu_custom_call.1} parent=19 // pred_region
          %p470 = scmp.lt.s32.totalorder %s34, 3
          %s471 = scalar_select %p470, %s34, 3
          %s472 = scalar_lea.vmem %s8, %s471
        $region56: #{tpu_custom_call.1} parent=19 // pred_fallthru
          _
        // Predicated region
        $region57: #{tpu_custom_call.1} parent=19 // pred_check
          %p473 = pneg %p300
        $region58: #{tpu_custom_call.1} parent=19 // pred_check_branch
          %475 = sbr.rel (%p473) target = $region60
        $region59: #{tpu_custom_call.1} parent=19 // pred_region
          %p476 = scmp.lt.s32.totalorder %s34, 3
          %s477 = scalar_select %p476, %s34, 3
          %s478 = smul.addr %s477, 8
          %s479 = scalar_lea.vmem %s9, %s478
        $region60: #{tpu_custom_call.1} parent=19 // pred_fallthru
          _
      $region20: #{tpu_custom_call.1} parent=5 // pred_fallthru
        _
      %p480 = scmp.le.s32.totalorder 1, %s25
      %p481 = scmp.lt.s32.totalorder %s25, 9
      %p482 = pnand %p480, %p481
      %p483 = pneg %p482
      // Predicated region
      $region61: #{tpu_custom_call.1} parent=5 // pred_check
        _
      $region62: #{tpu_custom_call.1} parent=5 // pred_check_branch
        %485 = sbr.rel (%p482) target = $region64
      $region63: #{tpu_custom_call.1} parent=5 // pred_region
        %s486 = ssub.s32 %s25, 1
        %p487 = scmp.lt.s32.totalorder %s35, 1
        %s488 = scalar_select %p487, %s35, 1
        %p489 = scmp.lt.s32.totalorder %s36, 0
        %s490 = scalar_select %p489, %s36, 0
        %s491 = sadd.s32 %s490, %s488
        %s492 = smul.addr %s491, 8
        %s493 = scalar_lea.vmem %s0, %s492
        %p494 = pneg %p72
        %p495 = pneg %p69
        %p496 = scmp.lt.s32.totalorder %s35, 1
        %s497 = scalar_select %p496, %s35, 1
        %s498 = smul.addr %s497, 8
        %s499 = scalar_lea.vmem %s1, %s498
        %p500 = pneg %p98
        %p501 = pneg %p95
        %p502 = scmp.lt.s32.totalorder %s35, 1
        %s503 = scalar_select %p502, %s35, 1
        %s504 = smul.addr %s503, 8
        %s505 = scalar_lea.vmem %s2, %s504
        %p506 = pneg %p124
        %p507 = pneg %p121
        %p508 = scmp.lt.s32.totalorder %s37, 3
        %s509 = scalar_select %p508, %s37, 3
        %s510 = smul.addr %s509, 4
        %s511 = smul.addr %s510, 8
        %s512 = scalar_lea.vmem %s3, %s511
        %p513 = pneg %p150
        %p514 = pneg %p147
        %p515 = scmp.lt.s32.totalorder %s37, 3
        %s516 = scalar_select %p515, %s37, 3
        %s517 = scalar_lea.vmem %s4, %s516
        %p518 = pneg %p176
        %p519 = pneg %p173
        %p520 = scmp.lt.s32.totalorder %s37, 3
        %s521 = scalar_select %p520, %s37, 3
        %s522 = smul.addr %s521, 4
        %s523 = smul.addr %s522, 8
        %s524 = scalar_lea.vmem %s5, %s523
        %p525 = pneg %p202
        %p526 = pneg %p199
        %p527 = scmp.lt.s32.totalorder %s37, 3
        %s528 = scalar_select %p527, %s37, 3
        %s529 = scalar_lea.vmem %s6, %s528
        %p530 = pneg %p228
        %p531 = pneg %p225
        %p532 = scmp.lt.s32.totalorder %s37, 3
        %s533 = scalar_select %p532, %s37, 3
        %s534 = smul.addr %s533, 4
        %s535 = smul.addr %s534, 8
        %s536 = scalar_lea.vmem %s7, %s535
        %p537 = pneg %p254
        %p538 = pneg %p251
        %p539 = scmp.lt.s32.totalorder %s37, 3
        %s540 = scalar_select %p539, %s37, 3
        %s541 = scalar_lea.vmem %s8, %s540
        %p542 = pneg %p280
        %p543 = pneg %p277
        %p544 = scmp.lt.s32.totalorder %s37, 3
        %s545 = scalar_select %p544, %s37, 3
        %s546 = smul.addr %s545, 8
        %s547 = scalar_lea.vmem %s9, %s546
        %p548 = pneg %p306
        %p549 = pneg %p303
        %p550 = pneg %p327
        %p551 = pneg %p324
        %p552 = pneg %p355
        %p553 = pneg %p352
        %s554 = sand.u32 %s342, 1
        %s555 = scalar_lea.sflag [#allocation4], %s554
        %s556 = sand.u32 %s342, 1
        %s557 = smul.addr %s556, 8
        %s558 = scalar_lea.vmem [#allocation3], %s557
        %p559 = pneg %p385
        %p560 = pneg %p382
        %s561 = sand.u32 %s372, 1
        %s562 = scalar_lea.sflag [#allocation6], %s561
        %s563 = sand.u32 %s372, 1
        %s564 = smul.addr %s563, 8
        %s565 = scalar_lea.vmem [#allocation5], %s564
        %p566 = scmp.lt.s32.totalorder %s35, 1
        %s567 = scalar_select %p566, %s35, 1
        %p568 = scmp.lt.s32.totalorder %s36, 0
        %s569 = scalar_select %p568, %s36, 0
        %s570 = sadd.s32 %s569, %s567
        %s571 = smul.addr %s570, 8
        %s572 = scalar_lea.vmem %s0, %s571
        %p573 = scmp.lt.s32.totalorder %s35, 1
        %s574 = scalar_select %p573, %s35, 1
        %s575 = smul.addr %s574, 8
        %s576 = scalar_lea.vmem %s1, %s575
        %p577 = scmp.lt.s32.totalorder %s35, 1
        %s578 = scalar_select %p577, %s35, 1
        %s579 = smul.addr %s578, 8
        %s580 = scalar_lea.vmem %s2, %s579
        %p581 = scmp.lt.s32.totalorder %s37, 3
        %s582 = scalar_select %p581, %s37, 3
        %s583 = smul.addr %s582, 4
        %s584 = smul.addr %s583, 8
        %s585 = scalar_lea.vmem %s3, %s584
        %p586 = scmp.lt.s32.totalorder %s37, 3
        %s587 = scalar_select %p586, %s37, 3
        %s588 = scalar_lea.vmem %s4, %s587
        %p589 = scmp.lt.s32.totalorder %s37, 3
        %s590 = scalar_select %p589, %s37, 3
        %s591 = smul.addr %s590, 4
        %s592 = smul.addr %s591, 8
        %s593 = scalar_lea.vmem %s5, %s592
        %p594 = scmp.lt.s32.totalorder %s37, 3
        %s595 = scalar_select %p594, %s37, 3
        %s596 = scalar_lea.vmem %s6, %s595
        %p597 = scmp.lt.s32.totalorder %s37, 3
        %s598 = scalar_select %p597, %s37, 3
        %s599 = smul.addr %s598, 4
        %s600 = smul.addr %s599, 8
        %s601 = scalar_lea.vmem %s7, %s600
        %p602 = scmp.lt.s32.totalorder %s37, 3
        %s603 = scalar_select %p602, %s37, 3
        %s604 = scalar_lea.vmem %s8, %s603
        %p605 = scmp.lt.s32.totalorder %s37, 3
        %s606 = scalar_select %p605, %s37, 3
        %s607 = smul.addr %s606, 8
        %s608 = scalar_lea.vmem %s9, %s607
        %v609 = vld [vmem:[%s572] sm:$0xff]
        %v610 = vld [vmem:[%s576] sm:$0xff]
        %v611 = vld [vmem:[%s580] sm:$0xff]
        %v612 = vld [vmem:[%s585] sm:$0xff]
        %v613 = vld [vmem:[%s585 + $0x8] sm:$0xff]
        %v614 = vld [vmem:[%s585 + $0x10] sm:$0xff]
        %v615 = vld [vmem:[%s585 + $0x18] sm:$0xff]
        %v616 = vld [vmem:[%s593] sm:$0xff]
        %v617 = vld [vmem:[%s593 + $0x8] sm:$0xff]
        %v618 = vld [vmem:[%s593 + $0x10] sm:$0xff]
        %v619 = vld [vmem:[%s593 + $0x18] sm:$0xff]
        %v620 = vld [vmem:[%s601] sm:$0xff]
        %v621 = vld [vmem:[%s601 + $0x8] sm:$0xff]
        %v622 = vld [vmem:[%s601 + $0x10] sm:$0xff]
        %v623 = vld [vmem:[%s601 + $0x18] sm:$0xff]
        %v624 = vld [vmem:[%s608] sm:$0xff]
        %v625 = vld [vmem:[%s588] sm:$0x1]
        %v627 = vlaneseq
        %v628 = vshrl.u32 %v627, 7
        %v629 = vsub.s32 0, %v628
        %v630 = vrot.slane %v625, %v629
        %vm632 = vcmask 261120
        %v634 = vsel %vm632, %v609, 0
        %636 = vmatprep.subr.mxu0 0.0
        %637 = vmatpush1.msra.mxu0 %v612
        %638 = vmatprep.subr.mxu0 0.0
        %639 = vmatpush1.msra.mxu0 %v613
        %640 = vmatprep.subr.mxu0 0.0
        %641 = vmatpush1.msra.mxu0 %v614
        %642 = vmatprep.subr.mxu0 0.0
        %643 = vmatpush1.msra.mxu0 %v615
        %644 = vmatprep.subr.mxu0 0.0
        %645 = vmatpush1.msra.mxu0 0.0
        %646 = vmatprep.subr.mxu0 0.0
        %647 = vmatpush1.msra.mxu0 0.0
        %648 = vmatprep.subr.mxu0 0.0
        %649 = vmatpush1.msra.mxu0 0.0
        %650 = vmatprep.subr.mxu0 0.0
        %651 = vmatpush1.msra.mxu0 0.0
        %652 = vmatprep.subr.mxu0 0.0
        %653 = vmatpush1.msra.mxu0 0.0
        %654 = vmatprep.subr.mxu0 0.0
        %655 = vmatpush1.msra.mxu0 0.0
        %656 = vmatprep.subr.mxu0 0.0
        %657 = vmatpush1.msra.mxu0 0.0
        %658 = vmatprep.subr.mxu0 0.0
        %659 = vmatpush1.msra.mxu0 0.0
        %660 = vmatprep.subr.mxu0 0.0
        %661 = vmatpush1.msra.mxu0 0.0
        %662 = vmatprep.subr.mxu0 0.0
        %663 = vmatpush1.msra.mxu0 0.0
        %664 = vmatprep.subr.mxu0 0.0
        %665 = vmatpush1.msra.mxu0 0.0
        %666 = vmatprep.subr.mxu0 0.0
        %667 = vmatpush1.msra.mxu0 0.0
        %668 = vmatprep.subr.mxu0 0.0
        %669 = vmatpush1.msra.mxu0 0.0
        %670 = vmatprep.subr.mxu0 0.0
        %671 = vmatpush1.msra.mxu0 0.0
        %672 = vmatprep.subr.mxu0 0.0
        %673 = vmatpush1.msra.mxu0 0.0
        %674 = vmatprep.subr.mxu0 0.0
        %675 = vmatpush1.msra.mxu0 0.0
        %676 = vmatprep.subr.mxu0 0.0
        %677 = vmatpush1.msra.mxu0 0.0
        %678 = vmatprep.subr.mxu0 0.0
        %679 = vmatpush1.msra.mxu0 0.0
        %680 = vmatprep.subr.mxu0 0.0
        %681 = vmatpush1.msra.mxu0 0.0
        %682 = vmatprep.subr.mxu0 0.0
        %683 = vmatpush1.msra.mxu0 0.0
        %684 = vmatprep.subr.mxu0 0.0
        %685 = vmatpush1.msra.mxu0 0.0
        %686 = vmatprep.subr.mxu0 0.0
        %687 = vmatpush1.msra.mxu0 0.0
        %688 = vmatprep.subr.mxu0 0.0
        %689 = vmatpush1.msra.mxu0 0.0
        %690 = vmatprep.subr.mxu0 0.0
        %691 = vmatpush1.msra.mxu0 0.0
        %692 = vmatprep.subr.mxu0 0.0
        %693 = vmatpush1.msra.mxu0 0.0
        %694 = vmatprep.subr.mxu0 0.0
        %695 = vmatpush1.msra.mxu0 0.0
        %696 = vmatprep.subr.mxu0 0.0
        %697 = vmatpush1.msra.mxu0 0.0
        %698 = vmatprep.subr.mxu0 0.0
        %699 = vmatpush1.msra.mxu0 0.0
        %700 = vmatprep.mubr.f32.mxu0 0.0
        %701 = vmatmul.mubr.f32.gmra.mrb[0].mxu0 %v634
        %v702 = vpop.f32.mrb[0].mxu0
        %v703 = vadd.f32 %v630, %v702
        %v704 = vpop.f32.mrb[0].mxu0
        %705 = vdwg.mxu0
        %v706 = vmul.f32 %v703, 0.35355338
        %v707 = vld [vmem:[%s596] sm:$0x1]
        %v709 = vlaneseq
        %v710 = vshrl.u32 %v709, 7
        %v711 = vsub.s32 0, %v710
        %v712 = vrot.slane %v707, %v711
        %v715 = vsel %vm632, %v610, 0
        %717 = vmatprep.subr.mxu0 0.0
        %718 = vmatpush1.msra.mxu0 %v616
        %719 = vmatprep.subr.mxu0 0.0
        %720 = vmatpush1.msra.mxu0 %v617
        %721 = vmatprep.subr.mxu0 0.0
        %722 = vmatpush1.msra.mxu0 %v618
        %723 = vmatprep.subr.mxu0 0.0
        %724 = vmatpush1.msra.mxu0 %v619
        %725 = vmatprep.subr.mxu0 0.0
        %726 = vmatpush1.msra.mxu0 0.0
        %727 = vmatprep.subr.mxu0 0.0
        %728 = vmatpush1.msra.mxu0 0.0
        %729 = vmatprep.subr.mxu0 0.0
        %730 = vmatpush1.msra.mxu0 0.0
        %731 = vmatprep.subr.mxu0 0.0
        %732 = vmatpush1.msra.mxu0 0.0
        %733 = vmatprep.subr.mxu0 0.0
        %734 = vmatpush1.msra.mxu0 0.0
        %735 = vmatprep.subr.mxu0 0.0
        %736 = vmatpush1.msra.mxu0 0.0
        %737 = vmatprep.subr.mxu0 0.0
        %738 = vmatpush1.msra.mxu0 0.0
        %739 = vmatprep.subr.mxu0 0.0
        %740 = vmatpush1.msra.mxu0 0.0
        %741 = vmatprep.subr.mxu0 0.0
        %742 = vmatpush1.msra.mxu0 0.0
        %743 = vmatprep.subr.mxu0 0.0
        %744 = vmatpush1.msra.mxu0 0.0
        %745 = vmatprep.subr.mxu0 0.0
        %746 = vmatpush1.msra.mxu0 0.0
        %747 = vmatprep.subr.mxu0 0.0
        %748 = vmatpush1.msra.mxu0 0.0
        %749 = vmatprep.subr.mxu0 0.0
        %750 = vmatpush1.msra.mxu0 0.0
        %751 = vmatprep.subr.mxu0 0.0
        %752 = vmatpush1.msra.mxu0 0.0
        %753 = vmatprep.subr.mxu0 0.0
        %754 = vmatpush1.msra.mxu0 0.0
        %755 = vmatprep.subr.mxu0 0.0
        %756 = vmatpush1.msra.mxu0 0.0
        %757 = vmatprep.subr.mxu0 0.0
        %758 = vmatpush1.msra.mxu0 0.0
        %759 = vmatprep.subr.mxu0 0.0
        %760 = vmatpush1.msra.mxu0 0.0
        %761 = vmatprep.subr.mxu0 0.0
        %762 = vmatpush1.msra.mxu0 0.0
        %763 = vmatprep.subr.mxu0 0.0
        %764 = vmatpush1.msra.mxu0 0.0
        %765 = vmatprep.subr.mxu0 0.0
        %766 = vmatpush1.msra.mxu0 0.0
        %767 = vmatprep.subr.mxu0 0.0
        %768 = vmatpush1.msra.mxu0 0.0
        %769 = vmatprep.subr.mxu0 0.0
        %770 = vmatpush1.msra.mxu0 0.0
        %771 = vmatprep.subr.mxu0 0.0
        %772 = vmatpush1.msra.mxu0 0.0
        %773 = vmatprep.subr.mxu0 0.0
        %774 = vmatpush1.msra.mxu0 0.0
        %775 = vmatprep.subr.mxu0 0.0
        %776 = vmatpush1.msra.mxu0 0.0
        %777 = vmatprep.subr.mxu0 0.0
        %778 = vmatpush1.msra.mxu0 0.0
        %779 = vmatprep.subr.mxu0 0.0
        %780 = vmatpush1.msra.mxu0 0.0
        %781 = vmatprep.mubr.f32.mxu0 0.0
        %782 = vmatmul.mubr.f32.gmra.mrb[0].mxu0 %v715
        %v783 = vpop.f32.mrb[0].mxu0
        %v784 = vadd.f32 %v712, %v783
        %v785 = vpop.f32.mrb[0].mxu0
        %786 = vdwg.mxu0
        %v787 = vld [vmem:[%s604] sm:$0x1]
        %v789 = vlaneseq
        %v790 = vshrl.u32 %v789, 7
        %v791 = vsub.s32 0, %v790
        %v792 = vrot.slane %v787, %v791
        %v795 = vsel %vm632, %v611, 0
        %797 = vmatprep.subr.mxu0 0.0
        %798 = vmatpush1.msra.mxu0 %v620
        %799 = vmatprep.subr.mxu0 0.0
        %800 = vmatpush1.msra.mxu0 %v621
        %801 = vmatprep.subr.mxu0 0.0
        %802 = vmatpush1.msra.mxu0 %v622
        %803 = vmatprep.subr.mxu0 0.0
        %804 = vmatpush1.msra.mxu0 %v623
        %805 = vmatprep.subr.mxu0 0.0
        %806 = vmatpush1.msra.mxu0 0.0
        %807 = vmatprep.subr.mxu0 0.0
        %808 = vmatpush1.msra.mxu0 0.0
        %809 = vmatprep.subr.mxu0 0.0
        %810 = vmatpush1.msra.mxu0 0.0
        %811 = vmatprep.subr.mxu0 0.0
        %812 = vmatpush1.msra.mxu0 0.0
        %813 = vmatprep.subr.mxu0 0.0
        %814 = vmatpush1.msra.mxu0 0.0
        %815 = vmatprep.subr.mxu0 0.0
        %816 = vmatpush1.msra.mxu0 0.0
        %817 = vmatprep.subr.mxu0 0.0
        %818 = vmatpush1.msra.mxu0 0.0
        %819 = vmatprep.subr.mxu0 0.0
        %820 = vmatpush1.msra.mxu0 0.0
        %821 = vmatprep.subr.mxu0 0.0
        %822 = vmatpush1.msra.mxu0 0.0
        %823 = vmatprep.subr.mxu0 0.0
        %824 = vmatpush1.msra.mxu0 0.0
        %825 = vmatprep.subr.mxu0 0.0
        %826 = vmatpush1.msra.mxu0 0.0
        %827 = vmatprep.subr.mxu0 0.0
        %828 = vmatpush1.msra.mxu0 0.0
        %829 = vmatprep.subr.mxu0 0.0
        %830 = vmatpush1.msra.mxu0 0.0
        %831 = vmatprep.subr.mxu0 0.0
        %832 = vmatpush1.msra.mxu0 0.0
        %833 = vmatprep.subr.mxu0 0.0
        %834 = vmatpush1.msra.mxu0 0.0
        %835 = vmatprep.subr.mxu0 0.0
        %836 = vmatpush1.msra.mxu0 0.0
        %837 = vmatprep.subr.mxu0 0.0
        %838 = vmatpush1.msra.mxu0 0.0
        %839 = vmatprep.subr.mxu0 0.0
        %840 = vmatpush1.msra.mxu0 0.0
        %841 = vmatprep.subr.mxu0 0.0
        %842 = vmatpush1.msra.mxu0 0.0
        %843 = vmatprep.subr.mxu0 0.0
        %844 = vmatpush1.msra.mxu0 0.0
        %845 = vmatprep.subr.mxu0 0.0
        %846 = vmatpush1.msra.mxu0 0.0
        %847 = vmatprep.subr.mxu0 0.0
        %848 = vmatpush1.msra.mxu0 0.0
        %849 = vmatprep.subr.mxu0 0.0
        %850 = vmatpush1.msra.mxu0 0.0
        %851 = vmatprep.subr.mxu0 0.0
        %852 = vmatpush1.msra.mxu0 0.0
        %853 = vmatprep.subr.mxu0 0.0
        %854 = vmatpush1.msra.mxu0 0.0
        %855 = vmatprep.subr.mxu0 0.0
        %856 = vmatpush1.msra.mxu0 0.0
        %857 = vmatprep.subr.mxu0 0.0
        %858 = vmatpush1.msra.mxu0 0.0
        %859 = vmatprep.subr.mxu0 0.0
        %860 = vmatpush1.msra.mxu0 0.0
        %861 = vmatprep.mubr.f32.mxu0 0.0
        %862 = vmatmul.mubr.f32.gmra.mrb[0].mxu0 %v795
        %v863 = vpop.f32.mrb[0].mxu0
        %v864 = vadd.f32 %v792, %v863
        %v865 = vpop.f32.mrb[0].mxu0
        %866 = vdwg.mxu0
        %vm867 = vcmask 64512
        %v869 = vsel %vm867, %v706, 0
        %v872 = vsel %vm867, %v784, 0
        %874 = vmatprep.subr.mxu0 0.0
        %875 = vmatpush1.xpose.msra.mxu0 %v872
        %876 = vmatprep.subr.mxu0 0.0
        %877 = vmatpush1.xpose.msra.mxu0 0.0
        %878 = vmatprep.subr.mxu0 0.0
        %879 = vmatpush1.xpose.msra.mxu0 0.0
        %880 = vmatprep.subr.mxu0 0.0
        %881 = vmatpush1.xpose.msra.mxu0 0.0
        %882 = vmatprep.subr.mxu0 0.0
        %883 = vmatpush1.xpose.msra.mxu0 0.0
        %884 = vmatprep.subr.mxu0 0.0
        %885 = vmatpush1.xpose.msra.mxu0 0.0
        %886 = vmatprep.subr.mxu0 0.0
        %887 = vmatpush1.xpose.msra.mxu0 0.0
        %888 = vmatprep.subr.mxu0 0.0
        %889 = vmatpush1.xpose.msra.mxu0 0.0
        %890 = vmatprep.subr.mxu0 0.0
        %891 = vmatpush1.xpose.msra.mxu0 0.0
        %892 = vmatprep.subr.mxu0 0.0
        %893 = vmatpush1.xpose.msra.mxu0 0.0
        %894 = vmatprep.subr.mxu0 0.0
        %895 = vmatpush1.xpose.msra.mxu0 0.0
        %896 = vmatprep.subr.mxu0 0.0
        %897 = vmatpush1.xpose.msra.mxu0 0.0
        %898 = vmatprep.subr.mxu0 0.0
        %899 = vmatpush1.xpose.msra.mxu0 0.0
        %900 = vmatprep.subr.mxu0 0.0
        %901 = vmatpush1.xpose.msra.mxu0 0.0
        %902 = vmatprep.subr.mxu0 0.0
        %903 = vmatpush1.xpose.msra.mxu0 0.0
        %904 = vmatprep.subr.mxu0 0.0
        %905 = vmatpush1.xpose.msra.mxu0 0.0
        %906 = vmatprep.subr.mxu0 0.0
        %907 = vmatpush1.xpose.msra.mxu0 0.0
        %908 = vmatprep.subr.mxu0 0.0
        %909 = vmatpush1.xpose.msra.mxu0 0.0
        %910 = vmatprep.subr.mxu0 0.0
        %911 = vmatpush1.xpose.msra.mxu0 0.0
        %912 = vmatprep.subr.mxu0 0.0
        %913 = vmatpush1.xpose.msra.mxu0 0.0
        %914 = vmatprep.subr.mxu0 0.0
        %915 = vmatpush1.xpose.msra.mxu0 0.0
        %916 = vmatprep.subr.mxu0 0.0
        %917 = vmatpush1.xpose.msra.mxu0 0.0
        %918 = vmatprep.subr.mxu0 0.0
        %919 = vmatpush1.xpose.msra.mxu0 0.0
        %920 = vmatprep.subr.mxu0 0.0
        %921 = vmatpush1.xpose.msra.mxu0 0.0
        %922 = vmatprep.subr.mxu0 0.0
        %923 = vmatpush1.xpose.msra.mxu0 0.0
        %924 = vmatprep.subr.mxu0 0.0
        %925 = vmatpush1.xpose.msra.mxu0 0.0
        %926 = vmatprep.subr.mxu0 0.0
        %927 = vmatpush1.xpose.msra.mxu0 0.0
        %928 = vmatprep.subr.mxu0 0.0
        %929 = vmatpush1.xpose.msra.mxu0 0.0
        %930 = vmatprep.subr.mxu0 0.0
        %931 = vmatpush1.xpose.msra.mxu0 0.0
        %932 = vmatprep.subr.mxu0 0.0
        %933 = vmatpush1.xpose.msra.mxu0 0.0
        %934 = vmatprep.subr.mxu0 0.0
        %935 = vmatpush1.xpose.msra.mxu0 0.0
        %936 = vmatprep.subr.mxu0 0.0
        %937 = vmatpush1.xpose.msra.mxu0 0.0
        %938 = vmatprep.mubr.f32.mxu0 0.0
        %939 = vmatmul.mubr.f32.gmra.mrb[0].mxu0 %v869
        %v940 = vpop.f32.mrb[0].mxu0
        %v941 = vadd.f32 0.0, %v940
        %v942 = vpop.f32.mrb[0].mxu0
        %943 = vdwg.mxu0
        %v944 = vsel %vm867, %v941, -inf
        %945 = vmax.xlane.f32.xlu0 %v944
        %v946 = vpop.xlane.xlu0 %945
        %v947 = vsub.f32 %v941, %v946
        %v948 = vmul.f32 %v947, 1.442695
        %v949 = vpow.pop %v948
        %v950 = vsel %vm867, %v949, 0.0
        %951 = vadd.xlane.f32.xlu0 %v950
        %v952 = vpop.xlane.xlu0 %951
        %v953 = vrcp.pop %v952
        %v954 = vmul.f32 %v949, %v953
        %955 = vst.msk [vmem:[%s565] sm:$0xff] %vm867, %v954
        %v957 = vsel %vm867, %v954, 0
        %959 = vmatprep.subr.mxu0 0.0
        %960 = vmatpush1.msra.mxu0 %v864
        %961 = vmatprep.subr.mxu0 0.0
        %962 = vmatpush1.msra.mxu0 0.0
        %963 = vmatprep.subr.mxu0 0.0
        %964 = vmatpush1.msra.mxu0 0.0
        %965 = vmatprep.subr.mxu0 0.0
        %966 = vmatpush1.msra.mxu0 0.0
        %967 = vmatprep.subr.mxu0 0.0
        %968 = vmatpush1.msra.mxu0 0.0
        %969 = vmatprep.subr.mxu0 0.0
        %970 = vmatpush1.msra.mxu0 0.0
        %971 = vmatprep.subr.mxu0 0.0
        %972 = vmatpush1.msra.mxu0 0.0
        %973 = vmatprep.subr.mxu0 0.0
        %974 = vmatpush1.msra.mxu0 0.0
        %975 = vmatprep.subr.mxu0 0.0
        %976 = vmatpush1.msra.mxu0 0.0
        %977 = vmatprep.subr.mxu0 0.0
        %978 = vmatpush1.msra.mxu0 0.0
        %979 = vmatprep.subr.mxu0 0.0
        %980 = vmatpush1.msra.mxu0 0.0
        %981 = vmatprep.subr.mxu0 0.0
        %982 = vmatpush1.msra.mxu0 0.0
        %983 = vmatprep.subr.mxu0 0.0
        %984 = vmatpush1.msra.mxu0 0.0
        %985 = vmatprep.subr.mxu0 0.0
        %986 = vmatpush1.msra.mxu0 0.0
        %987 = vmatprep.subr.mxu0 0.0
        %988 = vmatpush1.msra.mxu0 0.0
        %989 = vmatprep.subr.mxu0 0.0
        %990 = vmatpush1.msra.mxu0 0.0
        %991 = vmatprep.subr.mxu0 0.0
        %992 = vmatpush1.msra.mxu0 0.0
        %993 = vmatprep.subr.mxu0 0.0
        %994 = vmatpush1.msra.mxu0 0.0
        %995 = vmatprep.subr.mxu0 0.0
        %996 = vmatpush1.msra.mxu0 0.0
        %997 = vmatprep.subr.mxu0 0.0
        %998 = vmatpush1.msra.mxu0 0.0
        %999 = vmatprep.subr.mxu0 0.0
        %1000 = vmatpush1.msra.mxu0 0.0
        %1001 = vmatprep.subr.mxu0 0.0
        %1002 = vmatpush1.msra.mxu0 0.0
        %1003 = vmatprep.subr.mxu0 0.0
        %1004 = vmatpush1.msra.mxu0 0.0
        %1005 = vmatprep.subr.mxu0 0.0
        %1006 = vmatpush1.msra.mxu0 0.0
        %1007 = vmatprep.subr.mxu0 0.0
        %1008 = vmatpush1.msra.mxu0 0.0
        %1009 = vmatprep.subr.mxu0 0.0
        %1010 = vmatpush1.msra.mxu0 0.0
        %1011 = vmatprep.subr.mxu0 0.0
        %1012 = vmatpush1.msra.mxu0 0.0
        %1013 = vmatprep.subr.mxu0 0.0
        %1014 = vmatpush1.msra.mxu0 0.0
        %1015 = vmatprep.subr.mxu0 0.0
        %1016 = vmatpush1.msra.mxu0 0.0
        %1017 = vmatprep.subr.mxu0 0.0
        %1018 = vmatpush1.msra.mxu0 0.0
        %1019 = vmatprep.subr.mxu0 0.0
        %1020 = vmatpush1.msra.mxu0 0.0
        %1021 = vmatprep.subr.mxu0 0.0
        %1022 = vmatpush1.msra.mxu0 0.0
        %1023 = vmatprep.mubr.f32.mxu0 0.0
        %1024 = vmatmul.mubr.f32.gmra.mrb[0].mxu0 %v957
        %v1025 = vpop.f32.mrb[0].mxu0
        %v1026 = vadd.f32 0.0, %v1025
        %v1027 = vpop.f32.mrb[0].mxu0
        %1028 = vdwg.mxu0
        %v1030 = vsel %vm867, %v1026, 0
        %1032 = vmatprep.subr.mxu0 0.0
        %1033 = vmatpush1.msra.mxu0 %v624
        %1034 = vmatprep.subr.mxu0 0.0
        %1035 = vmatpush1.msra.mxu0 0.0
        %1036 = vmatprep.subr.mxu0 0.0
        %1037 = vmatpush1.msra.mxu0 0.0
        %1038 = vmatprep.subr.mxu0 0.0
        %1039 = vmatpush1.msra.mxu0 0.0
        %1040 = vmatprep.subr.mxu0 0.0
        %1041 = vmatpush1.msra.mxu0 0.0
        %1042 = vmatprep.subr.mxu0 0.0
        %1043 = vmatpush1.msra.mxu0 0.0
        %1044 = vmatprep.subr.mxu0 0.0
        %1045 = vmatpush1.msra.mxu0 0.0
        %1046 = vmatprep.subr.mxu0 0.0
        %1047 = vmatpush1.msra.mxu0 0.0
        %1048 = vmatprep.subr.mxu0 0.0
        %1049 = vmatpush1.msra.mxu0 0.0
        %1050 = vmatprep.subr.mxu0 0.0
        %1051 = vmatpush1.msra.mxu0 0.0
        %1052 = vmatprep.subr.mxu0 0.0
        %1053 = vmatpush1.msra.mxu0 0.0
        %1054 = vmatprep.subr.mxu0 0.0
        %1055 = vmatpush1.msra.mxu0 0.0
        %1056 = vmatprep.subr.mxu0 0.0
        %1057 = vmatpush1.msra.mxu0 0.0
        %1058 = vmatprep.subr.mxu0 0.0
        %1059 = vmatpush1.msra.mxu0 0.0
        %1060 = vmatprep.subr.mxu0 0.0
        %1061 = vmatpush1.msra.mxu0 0.0
        %1062 = vmatprep.subr.mxu0 0.0
        %1063 = vmatpush1.msra.mxu0 0.0
        %1064 = vmatprep.subr.mxu0 0.0
        %1065 = vmatpush1.msra.mxu0 0.0
        %1066 = vmatprep.subr.mxu0 0.0
        %1067 = vmatpush1.msra.mxu0 0.0
        %1068 = vmatprep.subr.mxu0 0.0
        %1069 = vmatpush1.msra.mxu0 0.0
        %1070 = vmatprep.subr.mxu0 0.0
        %1071 = vmatpush1.msra.mxu0 0.0
        %1072 = vmatprep.subr.mxu0 0.0
        %1073 = vmatpush1.msra.mxu0 0.0
        %1074 = vmatprep.subr.mxu0 0.0
        %1075 = vmatpush1.msra.mxu0 0.0
        %1076 = vmatprep.subr.mxu0 0.0
        %1077 = vmatpush1.msra.mxu0 0.0
        %1078 = vmatprep.subr.mxu0 0.0
        %1079 = vmatpush1.msra.mxu0 0.0
        %1080 = vmatprep.subr.mxu0 0.0
        %1081 = vmatpush1.msra.mxu0 0.0
        %1082 = vmatprep.subr.mxu0 0.0
        %1083 = vmatpush1.msra.mxu0 0.0
        %1084 = vmatprep.subr.mxu0 0.0
        %1085 = vmatpush1.msra.mxu0 0.0
        %1086 = vmatprep.subr.mxu0 0.0
        %1087 = vmatpush1.msra.mxu0 0.0
        %1088 = vmatprep.subr.mxu0 0.0
        %1089 = vmatpush1.msra.mxu0 0.0
        %1090 = vmatprep.subr.mxu0 0.0
        %1091 = vmatpush1.msra.mxu0 0.0
        %1092 = vmatprep.subr.mxu0 0.0
        %1093 = vmatpush1.msra.mxu0 0.0
        %1094 = vmatprep.subr.mxu0 0.0
        %1095 = vmatpush1.msra.mxu0 0.0
        %1096 = vmatprep.mubr.f32.mxu0 0.0
        %1097 = vmatmul.mubr.f32.gmra.mrb[0].mxu0 %v1030
        %v1098 = vpop.f32.mrb[0].mxu0
        %v1099 = vadd.f32 0.0, %v1098
        %v1100 = vpop.f32.mrb[0].mxu0
        %1101 = vdwg.mxu0
        %p1102 = scmp.eq.s32.totalorder %s37, 0
        // Predicated region
        $region65: #{tpu_custom_call.1} parent=63 // pred_check
          %p1103 = pneg %p1102
        $region66: #{tpu_custom_call.1} parent=63 // pred_check_branch
          %1105 = sbr.rel (%p1103) target = $region68
        $region67: #{tpu_custom_call.1} parent=63 // pred_region
          %1106 = vst.msk [vmem:[#allocation2] sm:$0xff] %vm632, 0.0
        $region68: #{tpu_custom_call.1} parent=63 // pred_fallthru
          _
        %v1107 = vld [vmem:[#allocation2] sm:$0xff]
        %v1108 = vadd.f32 %v1107, %v1099
        %1109 = vst.msk [vmem:[#allocation2] sm:$0xff] %vm632, %v1108
        %p1110 = scmp.eq.s32.totalorder %s37, 3
        // Predicated region
        $region69: #{tpu_custom_call.1} parent=63 // pred_check
          %p1111 = pneg %p1110
        $region70: #{tpu_custom_call.1} parent=63 // pred_check_branch
          %1113 = sbr.rel (%p1111) target = $region72
        $region71: #{tpu_custom_call.1} parent=63 // pred_region
          %v1114 = vld [vmem:[#allocation2] sm:$0xff]
          %v1115 = vld [vmem:[%s10] sm:$0x1]
          %v1117 = vlaneseq
          %v1118 = vshrl.u32 %v1117, 7
          %v1119 = vsub.s32 0, %v1118
          %v1120 = vrot.slane %v1115, %v1119
          %v1122 = vadd.f32 %v1114, %v1120
          %1123 = vst.msk [vmem:[%s558] sm:$0xff] %vm632, %v1122
        $region72: #{tpu_custom_call.1} parent=63 // pred_fallthru
          _
        %s1124 = sand.u32 %s342, 1
        %s1125 = scalar_lea.sflag [#allocation4], %s1124
        %s1126 = sand.u32 %s342, 1
        %s1127 = smul.addr %s1126, 8
        %s1128 = scalar_lea.vmem [#allocation3], %s1127
        %s1129 = sand.u32 %s372, 1
        %s1130 = scalar_lea.sflag [#allocation6], %s1129
        %s1131 = sand.u32 %s372, 1
        %s1132 = smul.addr %s1131, 8
        %s1133 = scalar_lea.vmem [#allocation5], %s1132
        // Predicated region
        $region73: #{tpu_custom_call.1} parent=63 // pred_check
          %p1134 = pneg %p352
        $region74: #{tpu_custom_call.1} parent=63 // pred_check_branch
          %1136 = sbr.rel (%p1134) target = $region76
        $region75: #{tpu_custom_call.1} parent=63 // pred_region
          %s1138 = ssub.s32 128, 128
          %1139 = vsyncadd %s1125, %s1138
          %s1140 = sadd.s32 %s36, %s35
          %s1141 = smul.addr %s1140, 128
          %s1142 = scalar_lea.hbm %s11, %s1141
          %s1144 = sshll.u32 %s1128, 4
          %s1145 = int_to_ptr.vmem [resolvable:$true] %s1144
          %1147 = dma.vmem_to_hbm [thread:$0]  %s1145, 128, %s1142, %s1125
        $region76: #{tpu_custom_call.1} parent=63 // pred_fallthru
          _
        // Predicated region
        $region77: #{tpu_custom_call.1} parent=63 // pred_check
          %p1148 = pneg %p382
        $region78: #{tpu_custom_call.1} parent=63 // pred_check_branch
          %1150 = sbr.rel (%p1148) target = $region80
        $region79: #{tpu_custom_call.1} parent=63 // pred_region
          %s1152 = ssub.s32 128, 128
          %1153 = vsyncadd %s1130, %s1152
          %s1154 = sadd.s32 %s36, %s37
          %s1155 = smul.addr %s35, 4
          %s1156 = sadd.s32 %s1154, %s1155
          %s1157 = smul.addr %s1156, 128
          %s1158 = scalar_lea.hbm %s12, %s1157
          %s1160 = sshll.u32 %s1133, 4
          %s1161 = int_to_ptr.vmem [resolvable:$true] %s1160
          %1163 = dma.vmem_to_hbm [thread:$0]  %s1161, 128, %s1158, %s1130
        $region80: #{tpu_custom_call.1} parent=63 // pred_fallthru
          _
      $region64: #{tpu_custom_call.1} parent=5 // pred_fallthru
        _
      %p1164 = scmp.le.s32.totalorder 2, %s25
      // Predicated region
      $region81: #{tpu_custom_call.1} parent=5 // pred_check
        %p1165 = pneg %p1164
      $region82: #{tpu_custom_call.1} parent=5 // pred_check_branch
        %1167 = sbr.rel (%p1165) target = $region84
      $region83: #{tpu_custom_call.1} parent=5 // pred_region
        %s1168 = ssub.s32 %s25, 2
        // Predicated region
        $region85: #{tpu_custom_call.1} parent=83 // pred_check
          %p1169 = pneg %p358
        $region86: #{tpu_custom_call.1} parent=83 // pred_check_branch
          %1171 = sbr.rel (%p1169) target = $region88
        $region87: #{tpu_custom_call.1} parent=83 // pred_region
          %s1172 = sand.u32 %s343, 1
          %s1173 = scalar_lea.sflag [#allocation4], %s1172
          %s1174 = sand.u32 %s343, 1
          %s1175 = smul.addr %s1174, 8
          %s1176 = scalar_lea.vmem [#allocation3], %s1175
          %1177 = dma.done %s1173, 128
        $region88: #{tpu_custom_call.1} parent=83 // pred_fallthru
          _
        // Predicated region
        $region89: #{tpu_custom_call.1} parent=83 // pred_check
          %p1178 = pneg %p388
        $region90: #{tpu_custom_call.1} parent=83 // pred_check_branch
          %1180 = sbr.rel (%p1178) target = $region92
        $region91: #{tpu_custom_call.1} parent=83 // pred_region
          %s1181 = sand.u32 %s373, 1
          %s1182 = scalar_lea.sflag [#allocation6], %s1181
          %s1183 = sand.u32 %s373, 1
          %s1184 = smul.addr %s1183, 8
          %s1185 = scalar_lea.vmem [#allocation5], %s1184
          %1186 = dma.done %s1182, 128
        $region92: #{tpu_custom_call.1} parent=83 // pred_fallthru
          _
      $region84: #{tpu_custom_call.1} parent=5 // pred_fallthru
        _
    $region6: #{tpu_custom_call.1} parent=1 // loop_footer
      %s29 = sadd.s32 1, %s25
    $region7: #{tpu_custom_call.1} parent=1 // loop_footer_branch
      %24 = sbr.rel target = $region3
    $region8: #{tpu_custom_call.1} parent=1 // loop_exit
      _
    %1187 = vsyncpa [#allocation4], 1
    %s1188 = scalar_lea.sflag [#allocation4], 1
    %1189 = vsyncpa %s1188, 1
    %1190 = vsyncpa [#allocation6], 1
    %s1191 = scalar_lea.sflag [#allocation6], 1
    %1192 = vsyncpa %s1191, 1

</llo_original>
